<compile_context>
chip_gen: v6e
topology: v6e:2x2x1
jax: 0.10.0
libtpu: 0.0.40
codegen_flags: <defaults>
</compile_context>

<pallas_src>
import functools

import jax
import jax.numpy as jnp
from jax import lax
from jax.experimental import pallas as pl
from jax.experimental.pallas import tpu as pltpu

_LOG2E = 1.4426950408889634   # log2(e): folded into w_q so the kernel uses exp2
_NEG_BIG = -1.0e30            # finite "-inf" (avoids inf-inf NaN in online softmax)


# ----------------------------------------------------------------------------
# small helpers
# ----------------------------------------------------------------------------
def _round_up(n, m):
    return ((n + m - 1) // m) * m


def _pick_tile(n, target):
    """Tile size + padded length for a row/sequence dim (target % 8 == 0)."""
    assert target % 8 == 0
    n8 = _round_up(max(int(n), 1), 8)
    if n8 <= target:
        return n8, n8
    return target, _round_up(int(n), target)


def _default_group_widths():
    """Preferred packed-head lane widths.  v5e prefers 128 (1 vst slot, no bf16
    VALU -> lower live-range pressure); v6e/v7x prefer 256."""
    try:
        kind = jax.devices()[0].device_kind.lower()
    except Exception:
        kind = ""
    if "v5 lite" in kind or "v5e" in kind or "v5lite" in kind:
        return (128, 256)
    return (256, 128)


def _head_group_size(heads, dim_head, widths):
    """#heads packed side-by-side per attention block so the lane width is a
    multiple of 128 (dense vregs, unmasked stores).  Falls back to all heads
    (block == full inner dim) when no preferred width divides evenly."""
    inner = heads * dim_head
    if inner < 128:
        return heads
    for width in widths:
        if width % dim_head == 0 and inner % width == 0:
            return width // dim_head
    return heads


# ----------------------------------------------------------------------------
# Fused linear projections:  y_i = x @ W_i (+ b_i), sharing one pass over x.
# ----------------------------------------------------------------------------
def pallas_fused_linear(x2d, weights_t, biases=None, *, out_dtype=None,
                        compute_dtype=jnp.bfloat16, tm_target=512):
    """x2d: (M, Din); weights_t: list of (Din, Dout_i) (pre-transposed /
    pre-scaled / cast by the caller); biases: optional list of (Dout_i,)
    (entries may be None).  Returns a tuple of (M, Dout_i)."""
    M, Din = x2d.shape
    n_out = len(weights_t)
    if biases is None:
        biases = [None] * n_out
    out_dtype = out_dtype if out_dtype is not None else x2d.dtype
    douts = [int(w.shape[1]) for w in weights_t]
    has_bias = [b is not None for b in biases]
    n_bias = sum(has_bias)

    # Row tile on a 'parallel' axis; explicit padding instead of a silent
    # full-size-block fallback so awkward M still pipelines predictably.
    tm, m_pad = _pick_tile(M, tm_target)
    if m_pad != M:
        x2d = jnp.pad(x2d, ((0, m_pad - M), (0, 0)))
    grid = (m_pad // tm,)

    def kernel(*refs):
        x_ref = refs[0]
        w_refs = refs[1:1 + n_out]
        b_refs = refs[1 + n_out:1 + n_out + n_bias]
        o_refs = refs[1 + n_out + n_bias:]
        x = x_ref[...].astype(compute_dtype)     # MXU feed, f32 accumulate
        bi = 0
        for j in range(n_out):
            acc = jnp.dot(x, w_refs[j][...], preferred_element_type=jnp.float32)
            if has_bias[j]:
                acc = acc + b_refs[bi][...].astype(jnp.float32)
                bi += 1
            o_refs[j][...] = acc.astype(o_refs[j].dtype)

    # TODO(synk): for very large Din (weight blocks x 2 buffers approaching
    # ~half of scoped VMEM, e.g. Din>=4096 on v7x's 64 MiB), add a K grid axis
    # with an f32 accumulator instead of holding the full weights resident.
    in_specs = [pl.BlockSpec((tm, Din), lambda i: (i, 0))]
    inputs = [x2d]
    for w in weights_t:
        in_specs.append(pl.BlockSpec((Din, int(w.shape[1])), lambda i: (0, 0)))
        inputs.append(w)
    for b in biases:
        if b is not None:
            d = int(b.shape[-1])
            in_specs.append(pl.BlockSpec((1, d), lambda i: (0, 0)))
            inputs.append(b.reshape(1, d).astype(jnp.float32))

    out_specs = tuple(pl.BlockSpec((tm, d), lambda i: (i, 0)) for d in douts)
    out_shape = tuple(jax.ShapeDtypeStruct((m_pad, d), out_dtype) for d in douts)

    cost = pl.CostEstimate(
        flops=int(2 * m_pad * Din * sum(douts)),
        transcendentals=0,
        bytes_accessed=int(x2d.size * x2d.dtype.itemsize
                           + sum(w.size * w.dtype.itemsize for w in weights_t)
                           + m_pad * sum(douts) * jnp.dtype(out_dtype).itemsize),
    )

    outs = pl.pallas_call(
        kernel,
        out_shape=out_shape,
        grid=grid,
        in_specs=in_specs,
        out_specs=out_specs,
        compiler_params=pltpu.CompilerParams(dimension_semantics=("parallel",)),
        cost_estimate=cost,
    )(*inputs)
    if m_pad != M:
        outs = tuple(o[:M] for o in outs)
    return tuple(outs)


# ----------------------------------------------------------------------------
# Flash-style attention over packed 'b n (h d)' q/k/v (no transposes).
# ----------------------------------------------------------------------------
def _flash_attn_kernel(q_ref, k_ref, v_ref, o_ref, m_sc, l_sc, acc_sc, *,
                       group, dh, tk, k_valid, approx_recip):
    """One (batch, head-group, q-tile, k-tile) online-softmax step.  Blocks are
    (Tq, group*dh) / (Tk, group*dh) with `group` heads side by side in lanes.
    scale*log2(e) is folded into the q projection, so softmax uses exp2.
    Running max/sum scratch is replicated across each head's dh lanes so all
    updates are plain full-vector ops; the finalize is a single lane-dense
    (Tq, group*dh) store."""
    ki = pl.program_id(3)
    nkt = pl.num_programs(3)

    @pl.when(ki == 0)
    def _init():
        m_sc[...] = jnp.full_like(m_sc, _NEG_BIG)
        l_sc[...] = jnp.zeros_like(l_sc)
        acc_sc[...] = jnp.zeros_like(acc_sc)

    need_mask = (k_valid % tk) != 0          # static: only when K was padded
    if need_mask:
        col = lax.broadcasted_iota(jnp.int32, (1, tk), 1) + ki * tk
        col_ok = col < k_valid               # (1, Tk)

    for g in range(group):                   # static unroll over heads in group
        cs = slice(g * dh, (g + 1) * dh)
        q = q_ref[:, cs]                     # (Tq, dh)
        k = k_ref[:, cs]                     # (Tk, dh)
        v = v_ref[:, cs]                     # (Tk, dh)

        # QK^T: contract last dims (no .T / XLU transpose).  s already carries
        # softmax scale * log2(e) (folded into w_q).
        s = lax.dot_general(q, k, (((1,), (1,)), ((), ())),
                            preferred_element_type=jnp.float32)   # (Tq, Tk) f32
        if need_mask:
            s = jnp.where(col_ok, s, _NEG_BIG)

        m_prev = m_sc[:, cs]                                      # (Tq, dh) repl.
        row_max = jnp.max(s, axis=-1, keepdims=True)              # (Tq, 1)
        m_new = jnp.maximum(m_prev, row_max)                      # (Tq, dh) repl.
        m_row = jnp.max(m_new, axis=-1, keepdims=True)            # (Tq, 1)  XLU
        alpha = jnp.exp2(m_prev - m_new)                          # (Tq, dh)
        p = jnp.exp2(s - m_row)                                   # (Tq, Tk) EUP

        l_sc[:, cs] = alpha * l_sc[:, cs] + jnp.sum(p, axis=-1, keepdims=True)
        acc_sc[:, cs] = alpha * acc_sc[:, cs] + jnp.dot(
            p.astype(v.dtype), v, preferred_element_type=jnp.float32)
        m_sc[:, cs] = m_new

    @pl.when(ki == nkt - 1)
    def _finalize():
        # One full-width lane-dense store (not per-head dh-wide masked writes).
        inv_l = pl.reciprocal(l_sc[...], approx=approx_recip)     # EUP slot
        o_ref[...] = (acc_sc[...] * inv_l).astype(o_ref.dtype)


def pallas_flash_attention(q2d, k2d, v2d, *, batch, heads, dim_head,
                           q_len, k_len, k_valid, out_dtype, tq, tk,
                           approx_recip=True, group_widths=None):
    """q2d: (batch*q_len, heads*dim_head); k2d/v2d: (batch*k_len, heads*dim_head)
    in packed 'b n (h d)' layout.  q_len/k_len are (padded) per-batch lengths
    that tq/tk divide exactly; k_valid <= k_len is the number of real context
    rows (padded K columns are masked in-kernel).  Returns (batch*q_len, inner)
    in 'b n (h d)' layout, ready for to_out."""
    assert q_len % tq == 0 and k_len % tk == 0
    inner = heads * dim_head
    if group_widths is None:
        group_widths = _default_group_widths()
    group = _head_group_size(heads, dim_head, group_widths)
    gdh = group * dim_head
    n_groups = heads // group
    nqt = q_len // tq
    nkt = k_len // tk

    kernel = functools.partial(_flash_attn_kernel, group=group, dh=dim_head,
                               tk=tk, k_valid=k_valid,
                               approx_recip=approx_recip)

    cost = pl.CostEstimate(
        flops=int(4 * batch * heads * q_len * k_valid * dim_head),
        transcendentals=int(batch * heads * q_len * k_valid),
        bytes_accessed=int(q2d.size * q2d.dtype.itemsize
                           + (k2d.size + v2d.size) * k2d.dtype.itemsize
                           + batch * q_len * inner
                           * jnp.dtype(out_dtype).itemsize),
    )

    # TODO(synk): if profiling still shows exposed K/V DMA per ki step, add
    # pipeline_mode=pl.Buffered(3) on the K/V BlockSpecs only.
    return pl.pallas_call(
        kernel,
        out_shape=jax.ShapeDtypeStruct((batch * q_len, inner), out_dtype),
        grid=(batch, n_groups, nqt, nkt),
        in_specs=[
            pl.BlockSpec((tq, gdh), lambda b, g, qi, ki: (b * nqt + qi, g)),
            pl.BlockSpec((tk, gdh), lambda b, g, qi, ki: (b * nkt + ki, g)),
            pl.BlockSpec((tk, gdh), lambda b, g, qi, ki: (b * nkt + ki, g)),
        ],
        out_specs=pl.BlockSpec((tq, gdh), lambda b, g, qi, ki: (b * nqt + qi, g)),
        scratch_shapes=[
            pltpu.VMEM((tq, gdh), jnp.float32),   # running max, replicated/head
            pltpu.VMEM((tq, gdh), jnp.float32),   # running sum, replicated/head
            pltpu.VMEM((tq, gdh), jnp.float32),   # f32 output accumulator
        ],
        compiler_params=pltpu.CompilerParams(
            dimension_semantics=("parallel", "parallel", "parallel", "arbitrary")),
        cost_estimate=cost,
    )(q2d, k2d, v2d)


# ----------------------------------------------------------------------------
# Full module forward.
# ----------------------------------------------------------------------------
def attention_forward(params, x, context=None, heads=8,
                      compute_dtype=jnp.bfloat16,
                      tq_target=512, tk_target=1024, tm_target=512):
    """Equivalent to the PyTorch Attention.forward (mask=None, dropout=0).
    compute_dtype sets the MXU matmul precision (bf16 = full-rate path on
    v5e/v6e/v7x); softmax math and accumulation stay in f32."""
    # TODO(synk): `mask` argument / nonzero dropout are not implemented.
    assert tq_target % 8 == 0 and tk_target % 8 == 0

    out_dtype_final = x.dtype
    B, Nq, Dq = x.shape
    ctx_in = x if context is None else context
    Nk, Dc = ctx_in.shape[1], ctx_in.shape[-1]

    inner_dim = params["w_q"].shape[0]                 # PyTorch (out, in) layout
    dim_head = inner_dim // heads
    scale = float(dim_head) ** (-0.5)
    is_f32 = jnp.dtype(compute_dtype) == jnp.dtype(jnp.float32)

    # Weights to (in, out); fold softmax scale * log2(e) into w_q (free: q is
    # pre-scaled by the projection, kernel uses native exp2); cast to the MXU
    # compute dtype.
    w_q_t = (params["w_q"].T * (scale * _LOG2E)).astype(compute_dtype)
    w_k_t = params["w_kv"][:inner_dim].T.astype(compute_dtype)
    w_v_t = params["w_kv"][inner_dim:].T.astype(compute_dtype)
    w_out_t = params["w_out"].T.astype(compute_dtype)
    b_out = params["b_out"]

    # ---- sequence-length padding / tile selection (explicit; no silent
    # full-size-block fallback). ----
    if context is None:
        n8 = _round_up(Nq, 8)
        if n8 <= tq_target:
            nq_pad = nk_pad = n8
            tq = tk = n8
        else:
            nq_pad = nk_pad = _round_up(Nq, tq_target)
            tq = tq_target
            tk = tk_target if nq_pad % tk_target == 0 else tq_target
    else:
        tq, nq_pad = _pick_tile(Nq, tq_target)
        tk, nk_pad = _pick_tile(Nk, tk_target)

    if nq_pad != Nq:
        x = jnp.pad(x, ((0, 0), (0, nq_pad - Nq), (0, 0)))
    if context is None:
        ctx = x
    else:
        ctx = context
        if nk_pad != Nk:
            ctx = jnp.pad(ctx, ((0, 0), (0, nk_pad - Nk), (0, 0)))

    x2d = x.reshape(B * nq_pad, Dq)
    if context is None:
        # to_q + to_kv fused: ONE pass over x yields q, k, v already in the
        # packed 'b n (h d)' layout the attention kernel consumes.
        q2d, k2d, v2d = pallas_fused_linear(
            x2d, [w_q_t, w_k_t, w_v_t],
            out_dtype=compute_dtype, compute_dtype=compute_dtype,
            tm_target=tm_target)
    else:
        c2d = ctx.reshape(B * nk_pad, Dc)
        (q2d,) = pallas_fused_linear(
            x2d, [w_q_t], out_dtype=compute_dtype,
            compute_dtype=compute_dtype, tm_target=tm_target)
        k2d, v2d = pallas_fused_linear(
            c2d, [w_k_t, w_v_t], out_dtype=compute_dtype,
            compute_dtype=compute_dtype, tm_target=tm_target)

    # Heads are indexed via BlockSpec columns; output comes back as
    # (B*nq_pad, inner_dim) == 'b n (h d)', so no head split/merge transposes.
    attn2d = pallas_flash_attention(
        q2d, k2d, v2d, batch=B, heads=heads, dim_head=dim_head,
        q_len=nq_pad, k_len=nk_pad, k_valid=Nk, out_dtype=compute_dtype,
        tq=tq, tk=tk, approx_recip=not is_f32)

    (out2d,) = pallas_fused_linear(
        attn2d, [w_out_t], biases=[b_out],
        out_dtype=out_dtype_final, compute_dtype=compute_dtype,
        tm_target=tm_target)
    out = out2d.reshape(B, nq_pad, Dq)
    if nq_pad != Nq:
        out = out[:, :Nq]
    return out


def init_params(key, query_dim, context_dim, heads, dim_head, dtype=jnp.float32):
    inner_dim = heads * dim_head
    k1, k2, k3, k4 = jax.random.split(key, 4)
    # deterministic small-scale init (synthetic weights, PyTorch (out,in) layout)
    w_q = 0.05 * jax.random.normal(k1, (inner_dim, query_dim), dtype)
    w_kv = 0.05 * jax.random.normal(k2, (inner_dim * 2, context_dim), dtype)
    w_out = 0.05 * jax.random.normal(k3, (query_dim, inner_dim), dtype)
    b_out = 0.05 * jax.random.normal(k4, (query_dim,), dtype)
    return {"w_q": w_q, "w_kv": w_kv, "w_out": w_out, "b_out": b_out}


def ref_attention(params, x, context=None, heads=8):
    """Pure-JAX f32 reference of the same math (PyTorch module semantics)."""
    q = x @ params["w_q"].T
    ctx = x if context is None else context
    kv = ctx @ params["w_kv"].T
    k_, v_ = jnp.split(kv, 2, axis=-1)
    B, Nq = x.shape[0], x.shape[1]
    dim_head = params["w_q"].shape[0] // heads

    def sh(t):
        b, n, _ = t.shape
        t = t.reshape(b, n, heads, dim_head)
        return jnp.transpose(t, (0, 2, 1, 3)).reshape(b * heads, n, dim_head)

    qh, kh, vh = sh(q), sh(k_), sh(v_)
    sim = jnp.einsum("bid,bjd->bij", qh, kh) * (dim_head ** -0.5)
    attn = jax.nn.softmax(sim, axis=-1)
    o = jnp.einsum("bij,bjd->bid", attn, vh)
    o = o.reshape(B, heads, Nq, dim_head)
    o = jnp.transpose(o, (0, 2, 1, 3)).reshape(B, Nq, heads * dim_head)
    return o @ params["w_out"].T + params["b_out"]


if __name__ == "__main__":
    key = jax.random.PRNGKey(0)
    kx, kp, kc, kp2 = jax.random.split(key, 4)

    # ---- Test 1: self-attention. B=2, seq=8, query_dim=32, heads=2, dh=16.
    B, N, query_dim = 2, 8, 32
    heads, dim_head = 2, 16
    x = jax.random.normal(kx, (B, N, query_dim), jnp.float32)
    params = init_params(kp, query_dim, query_dim, heads, dim_head)
    r = ref_attention(params, x, None, heads)

    # f32 compute path: tight check of the kernel math (exact reciprocal).
    out_f32 = jax.block_until_ready(
        attention_forward(params, x, context=None, heads=heads,
                          compute_dtype=jnp.float32))
    err32 = float(jnp.max(jnp.abs(out_f32 - r)))
    assert jnp.allclose(out_f32, r, atol=5e-3, rtol=5e-3), err32

    # bf16 MXU path (performance default): looser tolerance for bf16 matmuls.
    out_bf16 = jax.block_until_ready(
        attention_forward(params, x, context=None, heads=heads,
                          compute_dtype=jnp.bfloat16))
    errbf = float(jnp.max(jnp.abs(out_bf16.astype(jnp.float32) - r)))
    assert jnp.allclose(out_bf16.astype(jnp.float32), r,
                        atol=3e-2, rtol=3e-2), errbf

    # ---- Test 2: cross-attention with a non-multiple-of-8 context length
    # (exercises the explicit padding + K-column mask path). Nk=12, ctx_dim=48.
    Nk, context_dim = 12, 48
    ctx = jax.random.normal(kc, (B, Nk, context_dim), jnp.float32)
    params2 = init_params(kp2, query_dim, context_dim, heads, dim_head)
    r2 = ref_attention(params2, x, ctx, heads)
    out2 = jax.block_until_ready(
        attention_forward(params2, x, context=ctx, heads=heads,
                          compute_dtype=jnp.float32))
    err2 = float(jnp.max(jnp.abs(out2 - r2)))
    assert jnp.allclose(out2, r2, atol=5e-3, rtol=5e-3), err2

    print("KERNEL_OK")
</pallas_src>

<mosaic_0001>
module attributes {stable_mosaic.version = 11 : i64} {
  func.func @kernel(%arg0: i32, %arg1: memref<16x32xf32, #tpu.memory_space<vmem>>, %arg2: memref<32x32xf32, #tpu.memory_space<vmem>>, %arg3: memref<32x32xf32, #tpu.memory_space<vmem>>, %arg4: memref<32x32xf32, #tpu.memory_space<vmem>>, %arg5: memref<16x32xf32, #tpu.memory_space<vmem>>, %arg6: memref<16x32xf32, #tpu.memory_space<vmem>>, %arg7: memref<16x32xf32, #tpu.memory_space<vmem>>) attributes {dimension_semantics = [#tpu.dimension_semantics<parallel>], iteration_bounds = array<i64: 1>, scalar_prefetch = 0 : i64, scratch_operands = 0 : i64, tpu.core_type = #tpu.core_type<tc>, window_params = [{transform_indices = @transform_0, window_bounds = array<i64: 16, 32>}, {pipeline_mode = #tpu.pipeline_mode<synchronous>, transform_indices = @transform_1, window_bounds = array<i64: 32, 32>}, {pipeline_mode = #tpu.pipeline_mode<synchronous>, transform_indices = @transform_2, window_bounds = array<i64: 32, 32>}, {pipeline_mode = #tpu.pipeline_mode<synchronous>, transform_indices = @transform_3, window_bounds = array<i64: 32, 32>}, {transform_indices = @transform_4, window_bounds = array<i64: 16, 32>}, {transform_indices = @transform_5, window_bounds = array<i64: 16, 32>}, {transform_indices = @transform_6, window_bounds = array<i64: 16, 32>}]} {
    %c0 = arith.constant 0 : index
    %c0_0 = arith.constant 0 : index
    %0 = vector.load %arg1[%c0, %c0_0] : memref<16x32xf32, #tpu.memory_space<vmem>>, vector<16x32xf32>
    %c0_1 = arith.constant 0 : index
    %c0_2 = arith.constant 0 : index
    %1 = vector.load %arg2[%c0_1, %c0_2] : memref<32x32xf32, #tpu.memory_space<vmem>>, vector<32x32xf32>
    %cst = arith.constant dense<0.000000e+00> : vector<16x32xf32>
    %2 = tpu.matmul %0, %1, %cst {dimension_numbers = #tpu.dot_dimension_numbers<[1], [0], [0], [1], [0, 0, 1, 1], [], []>} : vector<16x32xf32>, vector<32x32xf32>, vector<16x32xf32> -> vector<16x32xf32>
    %c0_3 = arith.constant 0 : index
    %c0_4 = arith.constant 0 : index
    %3 = vector.load %arg5[%c0_3, %c0_4] : memref<16x32xf32, #tpu.memory_space<vmem>>, vector<16x32xf32>
    tpu.vector_store %arg5[%c0_3, %c0_4], %2 {strides = array<i32>} : memref<16x32xf32, #tpu.memory_space<vmem>>, vector<16x32xf32>,
    %c0_5 = arith.constant 0 : index
    %c0_6 = arith.constant 0 : index
    %4 = vector.load %arg3[%c0_5, %c0_6] : memref<32x32xf32, #tpu.memory_space<vmem>>, vector<32x32xf32>
    %cst_7 = arith.constant dense<0.000000e+00> : vector<16x32xf32>
    %5 = tpu.matmul %0, %4, %cst_7 {dimension_numbers = #tpu.dot_dimension_numbers<[1], [0], [0], [1], [0, 0, 1, 1], [], []>} : vector<16x32xf32>, vector<32x32xf32>, vector<16x32xf32> -> vector<16x32xf32>
    %c0_8 = arith.constant 0 : index
    %c0_9 = arith.constant 0 : index
    %6 = vector.load %arg6[%c0_8, %c0_9] : memref<16x32xf32, #tpu.memory_space<vmem>>, vector<16x32xf32>
    tpu.vector_store %arg6[%c0_8, %c0_9], %5 {strides = array<i32>} : memref<16x32xf32, #tpu.memory_space<vmem>>, vector<16x32xf32>,
    %c0_10 = arith.constant 0 : index
    %c0_11 = arith.constant 0 : index
    %7 = vector.load %arg4[%c0_10, %c0_11] : memref<32x32xf32, #tpu.memory_space<vmem>>, vector<32x32xf32>
    %cst_12 = arith.constant dense<0.000000e+00> : vector<16x32xf32>
    %8 = tpu.matmul %0, %7, %cst_12 {dimension_numbers = #tpu.dot_dimension_numbers<[1], [0], [0], [1], [0, 0, 1, 1], [], []>} : vector<16x32xf32>, vector<32x32xf32>, vector<16x32xf32> -> vector<16x32xf32>
    %c0_13 = arith.constant 0 : index
    %c0_14 = arith.constant 0 : index
    %9 = vector.load %arg7[%c0_13, %c0_14] : memref<16x32xf32, #tpu.memory_space<vmem>>, vector<16x32xf32>
    tpu.vector_store %arg7[%c0_13, %c0_14], %8 {strides = array<i32>} : memref<16x32xf32, #tpu.memory_space<vmem>>, vector<16x32xf32>,
    return
  }
  func.func @transform_0(%arg0: i32) -> (i32, i32) {
    %c0_i32 = arith.constant 0 : i32
    %c0_i32_0 = arith.constant 0 : i32
    return %arg0, %c0_i32 : i32, i32
  }
  func.func @transform_1(%arg0: i32) -> (i32, i32) {
    %c0_i32 = arith.constant 0 : i32
    %c0_i32_0 = arith.constant 0 : i32
    %c0_i32_1 = arith.constant 0 : i32
    return %c0_i32, %c0_i32_0 : i32, i32
  }
  func.func @transform_2(%arg0: i32) -> (i32, i32) {
    %c0_i32 = arith.constant 0 : i32
    %c0_i32_0 = arith.constant 0 : i32
    %c0_i32_1 = arith.constant 0 : i32
    return %c0_i32, %c0_i32_0 : i32, i32
  }
  func.func @transform_3(%arg0: i32) -> (i32, i32) {
    %c0_i32 = arith.constant 0 : i32
    %c0_i32_0 = arith.constant 0 : i32
    %c0_i32_1 = arith.constant 0 : i32
    return %c0_i32, %c0_i32_0 : i32, i32
  }
  func.func @transform_4(%arg0: i32) -> (i32, i32) {
    %c0_i32 = arith.constant 0 : i32
    %c0_i32_0 = arith.constant 0 : i32
    return %arg0, %c0_i32 : i32, i32
  }
  func.func @transform_5(%arg0: i32) -> (i32, i32) {
    %c0_i32 = arith.constant 0 : i32
    %c0_i32_0 = arith.constant 0 : i32
    return %arg0, %c0_i32 : i32, i32
  }
  func.func @transform_6(%arg0: i32) -> (i32, i32) {
    %c0_i32 = arith.constant 0 : i32
    %c0_i32_0 = arith.constant 0 : i32
    return %arg0, %c0_i32 : i32, i32
  }
}

</mosaic_0001>

<llo_original>
// kernel: tpu_custom_call.1
$region0: #{tpu_custom_call.1}
  #allocation0 [shape = 'u32[]', space=smem, size = 0x4, offset = 0x4, fixed_abs, tag = 'smem constant byte address 0x4 - core index']
  #allocation1 [shape = 'u32[144,128]{1,0:T(1,128)}', space=vmem, size = 0x12000, scoped, tag = 'internal scratch']
  %s0 = inlined_call_operand.hbm [shape: f32[16,32], index: 0, kind: input, shape index: {}]
  %s1 = inlined_call_operand.hbm [shape: f32[32,32], index: 1, kind: input, shape index: {}]
  %s2 = inlined_call_operand.hbm [shape: f32[32,32], index: 2, kind: input, shape index: {}]
  %s3 = inlined_call_operand.hbm [shape: f32[32,32], index: 3, kind: input, shape index: {}]
  %s4 = inlined_call_operand.hbm [shape: f32[16,32], index: 4, kind: output, shape index: {0}]
  %s5 = inlined_call_operand.hbm [shape: f32[16,32], index: 5, kind: output, shape index: {1}]
  %s6 = inlined_call_operand.hbm [shape: f32[16,32], index: 6, kind: output, shape index: {2}]
  %7 = xla_tuple %s4, %s5, %s6
  %s8 = sld [smem:[#allocation0]]
  $region58: #{tpu_custom_call.1} parent=0
    _
  %s10 = ssub.s32 1, %s8
  %s11 = scalar_select 0, %s10, %s8
  $region1: #{tpu_custom_call.1} parent=0
    #allocation2 [shape = 'u8[8192]{0}', space=vmem, size = 0x2000, scoped, tag = 'input window, operand 0, single buffered']
    #allocation3 [shape = 's32[1]{0}', space=sflag, size = 0x4, scoped, tag = 'scoped memory for tpu_custom_call.1']
    #allocation4 [shape = 's32[1]{0}', space=sflag, size = 0x4, scoped, tag = 'scoped memory for tpu_custom_call.1']
    #allocation5 [shape = 'u8[16384]{0}', space=vmem, size = 0x4000, scoped, tag = 'input window, operand 1, single buffered']
    #allocation6 [shape = 's32[1]{0}', space=sflag, size = 0x4, scoped, tag = 'scoped memory for tpu_custom_call.1']
    #allocation7 [shape = 'u8[16384]{0}', space=vmem, size = 0x4000, scoped, tag = 'input window, operand 2, single buffered']
    #allocation8 [shape = 'u8[16384]{0}', space=vmem, size = 0x4000, scoped, tag = 'input window, operand 3, single buffered']
    #allocation9 [shape = 's32[1]{0}', space=sflag, size = 0x4, scoped, tag = 'scoped memory for tpu_custom_call.1']
    #allocation10 [shape = 'u8[8192]{0}', space=vmem, size = 0x2000, scoped, tag = 'output window, operand 0, single buffered']
    #allocation11 [shape = 'u8[8192]{0}', space=vmem, size = 0x2000, scoped, tag = 'output window, operand 1, single buffered']
    #allocation12 [shape = 's32[1]{0}', space=sflag, size = 0x4, scoped, tag = 'scoped memory for tpu_custom_call.1']
    #allocation13 [shape = 'u8[8192]{0}', space=vmem, size = 0x2000, scoped, tag = 'output window, operand 2, single buffered']
    %12 = vsyncpa [#allocation3], 0
    %13 = vsyncpa [#allocation6], 0
    %14 = vsyncpa [#allocation9], 0
    %15 = vsyncpa [#allocation4], 0
    %16 = vsyncpa [#allocation12], 0
    // Predicated region
    $region2: #{tpu_custom_call.1} parent=1 // pred_check
      _
    $region3: #{tpu_custom_call.1} parent=1 // pred_check_branch
      %18 = sbr.rel (0) target = $region5
    $region4: #{tpu_custom_call.1} parent=1 // pred_region
      %s20 = ssub.s32 256, 256
      %21 = vsyncadd [#allocation3], %s20
      %s22 = sshll.u32 [#allocation2], 4
      %s23 = int_to_ptr.vmem [resolvable:$true] %s22
      %28 = dma.hbm_to_vmem [thread:$0]  %s0, 256, %s23, [#allocation3], 128, 128, 8
    $region5: #{tpu_custom_call.1} parent=1 // pred_fallthru
      _
    // Predicated region
    $region6: #{tpu_custom_call.1} parent=1 // pred_check
      _
    $region7: #{tpu_custom_call.1} parent=1 // pred_check_branch
      %30 = sbr.rel (0) target = $region9
    $region8: #{tpu_custom_call.1} parent=1 // pred_region
      %s32 = ssub.s32 512, 512
      %33 = vsyncadd [#allocation6], %s32
      %s34 = sshll.u32 [#allocation5], 4
      %s35 = int_to_ptr.vmem [resolvable:$true] %s34
      %40 = dma.hbm_to_vmem [thread:$0]  %s1, 512, %s35, [#allocation6], 128, 128, 8
    $region9: #{tpu_custom_call.1} parent=1 // pred_fallthru
      _
    // Predicated region
    $region10: #{tpu_custom_call.1} parent=1 // pred_check
      _
    $region11: #{tpu_custom_call.1} parent=1 // pred_check_branch
      %42 = sbr.rel (0) target = $region13
    $region12: #{tpu_custom_call.1} parent=1 // pred_region
      %s44 = ssub.s32 512, 512
      %45 = vsyncadd [#allocation6], %s44
      %s46 = sshll.u32 [#allocation7], 4
      %s47 = int_to_ptr.vmem [resolvable:$true] %s46
      %52 = dma.hbm_to_vmem [thread:$0]  %s2, 512, %s47, [#allocation6], 128, 128, 8
    $region13: #{tpu_custom_call.1} parent=1 // pred_fallthru
      _
    // Predicated region
    $region14: #{tpu_custom_call.1} parent=1 // pred_check
      _
    $region15: #{tpu_custom_call.1} parent=1 // pred_check_branch
      %54 = sbr.rel (0) target = $region17
    $region16: #{tpu_custom_call.1} parent=1 // pred_region
      %s56 = ssub.s32 512, 512
      %57 = vsyncadd [#allocation9], %s56
      %s58 = sshll.u32 [#allocation8], 4
      %s59 = int_to_ptr.vmem [resolvable:$true] %s58
      %64 = dma.hbm_to_vmem [thread:$0]  %s3, 512, %s59, [#allocation9], 128, 128, 8
    $region17: #{tpu_custom_call.1} parent=1 // pred_fallthru
      _
    // Predicated region
    $region18: #{tpu_custom_call.1} parent=1 // pred_check
      _
    $region19: #{tpu_custom_call.1} parent=1 // pred_check_branch
      %66 = sbr.rel (0) target = $region21
    $region20: #{tpu_custom_call.1} parent=1 // pred_region
      %67 = dma.done [#allocation3], 256
    $region21: #{tpu_custom_call.1} parent=1 // pred_fallthru
      _
    // Predicated region
    $region22: #{tpu_custom_call.1} parent=1 // pred_check
      _
    $region23: #{tpu_custom_call.1} parent=1 // pred_check_branch
      %69 = sbr.rel (0) target = $region25
    $region24: #{tpu_custom_call.1} parent=1 // pred_region
      %70 = dma.done [#allocation6], 512
    $region25: #{tpu_custom_call.1} parent=1 // pred_fallthru
      _
    // Predicated region
    $region26: #{tpu_custom_call.1} parent=1 // pred_check
      _
    $region27: #{tpu_custom_call.1} parent=1 // pred_check_branch
      %72 = sbr.rel (0) target = $region29
    $region28: #{tpu_custom_call.1} parent=1 // pred_region
      %73 = dma.done [#allocation6], 512
    $region29: #{tpu_custom_call.1} parent=1 // pred_fallthru
      _
    // Predicated region
    $region30: #{tpu_custom_call.1} parent=1 // pred_check
      _
    $region31: #{tpu_custom_call.1} parent=1 // pred_check_branch
      %75 = sbr.rel (0) target = $region33
    $region32: #{tpu_custom_call.1} parent=1 // pred_region
      %76 = dma.done [#allocation9], 512
    $region33: #{tpu_custom_call.1} parent=1 // pred_fallthru
      _
    %v77 = vld [vmem:[#allocation2] sm:$0xff]
    %v78 = vld [vmem:[#allocation2 + $0x8] sm:$0xff]
    %v79 = vld [vmem:[#allocation5] sm:$0xff]
    %v80 = vld [vmem:[#allocation5 + $0x8] sm:$0xff]
    %v81 = vld [vmem:[#allocation5 + $0x10] sm:$0xff]
    %v82 = vld [vmem:[#allocation5 + $0x18] sm:$0xff]
    %vm83 = vcmask 261120
    %v85 = vsel %vm83, %v77, 0
    %v88 = vsel %vm83, %v78, 0
    %90 = vmatprep.subr.mxu0 0.0
    %91 = vmatpush1.msra.mxu0 0.0
    %92 = vmatprep.subr.mxu0 0.0
    %93 = vmatpush1.msra.mxu0 0.0
    %94 = vmatprep.subr.mxu0 0.0
    %95 = vmatpush1.msra.mxu0 0.0
    %96 = vmatprep.subr.mxu0 0.0
    %97 = vmatpush1.msra.mxu0 0.0
    %98 = vmatprep.subr.mxu0 0.0
    %99 = vmatpush1.msra.mxu0 0.0
    %100 = vmatprep.subr.mxu0 0.0
    %101 = vmatpush1.msra.mxu0 0.0
    %102 = vmatprep.subr.mxu0 0.0
    %103 = vmatpush1.msra.mxu0 0.0
    %104 = vmatprep.subr.mxu0 0.0
    %105 = vmatpush1.msra.mxu0 0.0
    %106 = vmatprep.subr.mxu0 0.0
    %107 = vmatpush1.msra.mxu0 0.0
    %108 = vmatprep.subr.mxu0 0.0
    %109 = vmatpush1.msra.mxu0 0.0
    %110 = vmatprep.subr.mxu0 0.0
    %111 = vmatpush1.msra.mxu0 0.0
    %112 = vmatprep.subr.mxu0 0.0
    %113 = vmatpush1.msra.mxu0 0.0
    %114 = vmatprep.subr.mxu0 0.0
    %115 = vmatpush1.msra.mxu0 %v82
    %116 = vmatprep.subr.mxu0 0.0
    %117 = vmatpush1.msra.mxu0 %v81
    %118 = vmatprep.subr.mxu0 0.0
    %119 = vmatpush1.msra.mxu0 %v80
    %120 = vmatprep.subr.mxu0 0.0
    %121 = vmatpush1.msra.mxu0 %v79
    %122 = vmatprep.subr.mxu0 0.0
    %123 = vmatpush2.msra.mxu0 0.0
    %124 = vmatprep.subr.mxu0 0.0
    %125 = vmatpush2.msra.mxu0 0.0
    %126 = vmatprep.subr.mxu0 0.0
    %127 = vmatpush2.msra.mxu0 0.0
    %128 = vmatprep.subr.mxu0 0.0
    %129 = vmatpush2.msra.mxu0 0.0
    %130 = vmatprep.subr.mxu0 0.0
    %131 = vmatpush2.msra.mxu0 0.0
    %132 = vmatprep.subr.mxu0 0.0
    %133 = vmatpush2.msra.mxu0 0.0
    %134 = vmatprep.subr.mxu0 0.0
    %135 = vmatpush2.msra.mxu0 0.0
    %136 = vmatprep.subr.mxu0 0.0
    %137 = vmatpush2.msra.mxu0 0.0
    %138 = vmatprep.subr.mxu0 0.0
    %139 = vmatpush2.msra.mxu0 0.0
    %140 = vmatprep.subr.mxu0 0.0
    %141 = vmatpush2.msra.mxu0 0.0
    %142 = vmatprep.subr.mxu0 0.0
    %143 = vmatpush2.msra.mxu0 0.0
    %144 = vmatprep.subr.mxu0 0.0
    %145 = vmatpush2.msra.mxu0 0.0
    %146 = vmatprep.subr.mxu0 0.0
    %147 = vmatpush2.msra.mxu0 0.0
    %148 = vmatprep.subr.mxu0 0.0
    %149 = vmatpush2.msra.mxu0 0.0
    %150 = vmatprep.subr.mxu0 0.0
    %151 = vmatpush2.msra.mxu0 0.0
    %152 = vmatprep.subr.mxu0 0.0
    %153 = vmatpush2.msra.mxu0 0.0
    %154 = vmatprep.mubr.f32.mxu0 0.0
    %155 = vmatmul.mubr.f32.gmra.mxu0 %v85
    %v156 = vpop.f32.mrf.mxu0
    %v157 = vadd.f32 0.0, %v156
    %v158 = vpop.f32.mrf.mxu0
    %159 = vmatprep.mubr.f32.mxu0 0.0
    %160 = vmatmul.mubr.f32.gmra.mxu0 %v88
    %v161 = vpop.f32.mrf.mxu0
    %v162 = vadd.f32 0.0, %v161
    %v163 = vpop.f32.mrf.mxu0
    %164 = vdwg.mxu0
    %165 = vst.msk [vmem:[#allocation10] sm:$0xff] %vm83, %v157
    %166 = vst.msk [vmem:[#allocation10 + $0x8] sm:$0xff] %vm83, %v162
    %v167 = vld [vmem:[#allocation7] sm:$0xff]
    %v168 = vld [vmem:[#allocation7 + $0x8] sm:$0xff]
    %v169 = vld [vmem:[#allocation7 + $0x10] sm:$0xff]
    %v170 = vld [vmem:[#allocation7 + $0x18] sm:$0xff]
    %171 = vmatprep.subr.mxu0 0.0
    %172 = vmatpush1.msra.mxu0 0.0
    %173 = vmatprep.subr.mxu0 0.0
    %174 = vmatpush1.msra.mxu0 0.0
    %175 = vmatprep.subr.mxu0 0.0
    %176 = vmatpush1.msra.mxu0 0.0
    %177 = vmatprep.subr.mxu0 0.0
    %178 = vmatpush1.msra.mxu0 0.0
    %179 = vmatprep.subr.mxu0 0.0
    %180 = vmatpush1.msra.mxu0 0.0
    %181 = vmatprep.subr.mxu0 0.0
    %182 = vmatpush1.msra.mxu0 0.0
    %183 = vmatprep.subr.mxu0 0.0
    %184 = vmatpush1.msra.mxu0 0.0
    %185 = vmatprep.subr.mxu0 0.0
    %186 = vmatpush1.msra.mxu0 0.0
    %187 = vmatprep.subr.mxu0 0.0
    %188 = vmatpush1.msra.mxu0 0.0
    %189 = vmatprep.subr.mxu0 0.0
    %190 = vmatpush1.msra.mxu0 0.0
    %191 = vmatprep.subr.mxu0 0.0
    %192 = vmatpush1.msra.mxu0 0.0
    %193 = vmatprep.subr.mxu0 0.0
    %194 = vmatpush1.msra.mxu0 0.0
    %195 = vmatprep.subr.mxu0 0.0
    %196 = vmatpush1.msra.mxu0 %v170
    %197 = vmatprep.subr.mxu0 0.0
    %198 = vmatpush1.msra.mxu0 %v169
    %199 = vmatprep.subr.mxu0 0.0
    %200 = vmatpush1.msra.mxu0 %v168
    %201 = vmatprep.subr.mxu0 0.0
    %202 = vmatpush1.msra.mxu0 %v167
    %203 = vmatprep.subr.mxu0 0.0
    %204 = vmatpush2.msra.mxu0 0.0
    %205 = vmatprep.subr.mxu0 0.0
    %206 = vmatpush2.msra.mxu0 0.0
    %207 = vmatprep.subr.mxu0 0.0
    %208 = vmatpush2.msra.mxu0 0.0
    %209 = vmatprep.subr.mxu0 0.0
    %210 = vmatpush2.msra.mxu0 0.0
    %211 = vmatprep.subr.mxu0 0.0
    %212 = vmatpush2.msra.mxu0 0.0
    %213 = vmatprep.subr.mxu0 0.0
    %214 = vmatpush2.msra.mxu0 0.0
    %215 = vmatprep.subr.mxu0 0.0
    %216 = vmatpush2.msra.mxu0 0.0
    %217 = vmatprep.subr.mxu0 0.0
    %218 = vmatpush2.msra.mxu0 0.0
    %219 = vmatprep.subr.mxu0 0.0
    %220 = vmatpush2.msra.mxu0 0.0
    %221 = vmatprep.subr.mxu0 0.0
    %222 = vmatpush2.msra.mxu0 0.0
    %223 = vmatprep.subr.mxu0 0.0
    %224 = vmatpush2.msra.mxu0 0.0
    %225 = vmatprep.subr.mxu0 0.0
    %226 = vmatpush2.msra.mxu0 0.0
    %227 = vmatprep.subr.mxu0 0.0
    %228 = vmatpush2.msra.mxu0 0.0
    %229 = vmatprep.subr.mxu0 0.0
    %230 = vmatpush2.msra.mxu0 0.0
    %231 = vmatprep.subr.mxu0 0.0
    %232 = vmatpush2.msra.mxu0 0.0
    %233 = vmatprep.subr.mxu0 0.0
    %234 = vmatpush2.msra.mxu0 0.0
    %235 = vmatprep.mubr.f32.mxu0 0.0
    %236 = vmatmul.mubr.f32.gmra.mxu0 %v85
    %v237 = vpop.f32.mrf.mxu0
    %v238 = vadd.f32 0.0, %v237
    %v239 = vpop.f32.mrf.mxu0
    %240 = vmatprep.mubr.f32.mxu0 0.0
    %241 = vmatmul.mubr.f32.gmra.mxu0 %v88
    %v242 = vpop.f32.mrf.mxu0
    %v243 = vadd.f32 0.0, %v242
    %v244 = vpop.f32.mrf.mxu0
    %245 = vdwg.mxu0
    %246 = vst.msk [vmem:[#allocation11] sm:$0xff] %vm83, %v238
    %247 = vst.msk [vmem:[#allocation11 + $0x8] sm:$0xff] %vm83, %v243
    %v248 = vld [vmem:[#allocation8] sm:$0xff]
    %v249 = vld [vmem:[#allocation8 + $0x8] sm:$0xff]
    %v250 = vld [vmem:[#allocation8 + $0x10] sm:$0xff]
    %v251 = vld [vmem:[#allocation8 + $0x18] sm:$0xff]
    %252 = vmatprep.subr.mxu0 0.0
    %253 = vmatpush1.msra.mxu0 0.0
    %254 = vmatprep.subr.mxu0 0.0
    %255 = vmatpush1.msra.mxu0 0.0
    %256 = vmatprep.subr.mxu0 0.0
    %257 = vmatpush1.msra.mxu0 0.0
    %258 = vmatprep.subr.mxu0 0.0
    %259 = vmatpush1.msra.mxu0 0.0
    %260 = vmatprep.subr.mxu0 0.0
    %261 = vmatpush1.msra.mxu0 0.0
    %262 = vmatprep.subr.mxu0 0.0
    %263 = vmatpush1.msra.mxu0 0.0
    %264 = vmatprep.subr.mxu0 0.0
    %265 = vmatpush1.msra.mxu0 0.0
    %266 = vmatprep.subr.mxu0 0.0
    %267 = vmatpush1.msra.mxu0 0.0
    %268 = vmatprep.subr.mxu0 0.0
    %269 = vmatpush1.msra.mxu0 0.0
    %270 = vmatprep.subr.mxu0 0.0
    %271 = vmatpush1.msra.mxu0 0.0
    %272 = vmatprep.subr.mxu0 0.0
    %273 = vmatpush1.msra.mxu0 0.0
    %274 = vmatprep.subr.mxu0 0.0
    %275 = vmatpush1.msra.mxu0 0.0
    %276 = vmatprep.subr.mxu0 0.0
    %277 = vmatpush1.msra.mxu0 %v251
    %278 = vmatprep.subr.mxu0 0.0
    %279 = vmatpush1.msra.mxu0 %v250
    %280 = vmatprep.subr.mxu0 0.0
    %281 = vmatpush1.msra.mxu0 %v249
    %282 = vmatprep.subr.mxu0 0.0
    %283 = vmatpush1.msra.mxu0 %v248
    %284 = vmatprep.subr.mxu0 0.0
    %285 = vmatpush2.msra.mxu0 0.0
    %286 = vmatprep.subr.mxu0 0.0
    %287 = vmatpush2.msra.mxu0 0.0
    %288 = vmatprep.subr.mxu0 0.0
    %289 = vmatpush2.msra.mxu0 0.0
    %290 = vmatprep.subr.mxu0 0.0
    %291 = vmatpush2.msra.mxu0 0.0
    %292 = vmatprep.subr.mxu0 0.0
    %293 = vmatpush2.msra.mxu0 0.0
    %294 = vmatprep.subr.mxu0 0.0
    %295 = vmatpush2.msra.mxu0 0.0
    %296 = vmatprep.subr.mxu0 0.0
    %297 = vmatpush2.msra.mxu0 0.0
    %298 = vmatprep.subr.mxu0 0.0
    %299 = vmatpush2.msra.mxu0 0.0
    %300 = vmatprep.subr.mxu0 0.0
    %301 = vmatpush2.msra.mxu0 0.0
    %302 = vmatprep.subr.mxu0 0.0
    %303 = vmatpush2.msra.mxu0 0.0
    %304 = vmatprep.subr.mxu0 0.0
    %305 = vmatpush2.msra.mxu0 0.0
    %306 = vmatprep.subr.mxu0 0.0
    %307 = vmatpush2.msra.mxu0 0.0
    %308 = vmatprep.subr.mxu0 0.0
    %309 = vmatpush2.msra.mxu0 0.0
    %310 = vmatprep.subr.mxu0 0.0
    %311 = vmatpush2.msra.mxu0 0.0
    %312 = vmatprep.subr.mxu0 0.0
    %313 = vmatpush2.msra.mxu0 0.0
    %314 = vmatprep.subr.mxu0 0.0
    %315 = vmatpush2.msra.mxu0 0.0
    %316 = vmatprep.mubr.f32.mxu0 0.0
    %317 = vmatmul.mubr.f32.gmra.mxu0 %v85
    %v318 = vpop.f32.mrf.mxu0
    %v319 = vadd.f32 0.0, %v318
    %v320 = vpop.f32.mrf.mxu0
    %321 = vmatprep.mubr.f32.mxu0 0.0
    %322 = vmatmul.mubr.f32.gmra.mxu0 %v88
    %v323 = vpop.f32.mrf.mxu0
    %v324 = vadd.f32 0.0, %v323
    %v325 = vpop.f32.mrf.mxu0
    %326 = vdwg.mxu0
    %327 = vst.msk [vmem:[#allocation13] sm:$0xff] %vm83, %v319
    %328 = vst.msk [vmem:[#allocation13 + $0x8] sm:$0xff] %vm83, %v324
    // Predicated region
    $region34: #{tpu_custom_call.1} parent=1 // pred_check
      _
    $region35: #{tpu_custom_call.1} parent=1 // pred_check_branch
      %330 = sbr.rel (0) target = $region37
    $region36: #{tpu_custom_call.1} parent=1 // pred_region
      %s332 = ssub.s32 256, 256
      %333 = vsyncadd [#allocation4], %s332
      %s334 = sshll.u32 [#allocation10], 4
      %s335 = int_to_ptr.vmem [resolvable:$true] %s334
      %340 = dma.vmem_to_hbm [thread:$0]  %s335, 256, %s4, [#allocation4], 128, 128, 8
    $region37: #{tpu_custom_call.1} parent=1 // pred_fallthru
      _
    // Predicated region
    $region38: #{tpu_custom_call.1} parent=1 // pred_check
      _
    $region39: #{tpu_custom_call.1} parent=1 // pred_check_branch
      %342 = sbr.rel (0) target = $region41
    $region40: #{tpu_custom_call.1} parent=1 // pred_region
      %s344 = ssub.s32 256, 256
      %345 = vsyncadd [#allocation12], %s344
      %s346 = sshll.u32 [#allocation11], 4
      %s347 = int_to_ptr.vmem [resolvable:$true] %s346
      %352 = dma.vmem_to_hbm [thread:$0]  %s347, 256, %s5, [#allocation12], 128, 128, 8
    $region41: #{tpu_custom_call.1} parent=1 // pred_fallthru
      _
    // Predicated region
    $region42: #{tpu_custom_call.1} parent=1 // pred_check
      _
    $region43: #{tpu_custom_call.1} parent=1 // pred_check_branch
      %354 = sbr.rel (0) target = $region45
    $region44: #{tpu_custom_call.1} parent=1 // pred_region
      %s356 = ssub.s32 256, 256
      %357 = vsyncadd [#allocation12], %s356
      %s358 = sshll.u32 [#allocation13], 4
      %s359 = int_to_ptr.vmem [resolvable:$true] %s358
      %364 = dma.vmem_to_hbm [thread:$0]  %s359, 256, %s6, [#allocation12], 128, 128, 8
    $region45: #{tpu_custom_call.1} parent=1 // pred_fallthru
      _
    // Predicated region
    $region46: #{tpu_custom_call.1} parent=1 // pred_check
      _
    $region47: #{tpu_custom_call.1} parent=1 // pred_check_branch
      %366 = sbr.rel (0) target = $region49
    $region48: #{tpu_custom_call.1} parent=1 // pred_region
      %367 = dma.done [#allocation4], 256
    $region49: #{tpu_custom_call.1} parent=1 // pred_fallthru
      _
    // Predicated region
    $region50: #{tpu_custom_call.1} parent=1 // pred_check
      _
    $region51: #{tpu_custom_call.1} parent=1 // pred_check_branch
      %369 = sbr.rel (0) target = $region53
    $region52: #{tpu_custom_call.1} parent=1 // pred_region
      %370 = dma.done [#allocation12], 256
    $region53: #{tpu_custom_call.1} parent=1 // pred_fallthru
      _
    // Predicated region
    $region54: #{tpu_custom_call.1} parent=1 // pred_check
      _
    $region55: #{tpu_custom_call.1} parent=1 // pred_check_branch
      %372 = sbr.rel (0) target = $region57
    $region56: #{tpu_custom_call.1} parent=1 // pred_region
      %373 = dma.done [#allocation12], 256
    $region57: #{tpu_custom_call.1} parent=1 // pred_fallthru
      _
    %374 = vsyncpa [#allocation3], 1
    %375 = vsyncpa [#allocation6], 1
    %376 = vsyncpa [#allocation9], 1
    %377 = vsyncpa [#allocation4], 1
    %378 = vsyncpa [#allocation12], 1

</llo_original>
